<compile_context>
chip_gen: v5e
topology: v5e:2x2
jax: 0.10.0
libtpu: 0.0.40
codegen_flags: <defaults>
</compile_context>

<pallas_src>
import jax
import jax.numpy as jnp
from jax.experimental import pallas as pl
from jax.experimental.pallas import tpu as pltpu


def _round_up(x, m):
    return (x + m - 1) // m * m


# ---------------------------------------------------------------------------
# Kernel
# ---------------------------------------------------------------------------
def _make_kernel(n_hidden):
    """Fused double-Q MLP on one (tm, ...) batch tile.

    Ref order: obs, act, w0_obs, w0_act, b0, [wh, bh], wl, bl, out
    """

    def kernel(obs_ref, act_ref, w0o_ref, w0a_ref, b0_ref, *rest):
        if n_hidden > 0:
            wh_ref, bh_ref, wl_ref, bl_ref, out_ref = rest
        else:
            wl_ref, bl_ref, out_ref = rest

        # Layer 0: concat folded into two matmuls (no obs_action in HBM).
        h = (jnp.dot(obs_ref[...], w0o_ref[...], preferred_element_type=jnp.float32)
             + jnp.dot(act_ref[...], w0a_ref[...], preferred_element_type=jnp.float32)
             + b0_ref[...])

        # Hidden layers: block-diagonal fused weights, static unrolled loop.
        for i in range(n_hidden):
            h = jnp.maximum(h, 0.0)
            h = jnp.dot(h, wh_ref[i], preferred_element_type=jnp.float32) + bh_ref[i]

        # Fused final heads: one matmul -> lane-dense (tm, 128) store.
        h = jnp.maximum(h, 0.0)
        out_ref[...] = (jnp.dot(h, wl_ref[...], preferred_element_type=jnp.float32)
                        + bl_ref[...]).astype(out_ref.dtype)

    return kernel


# ---------------------------------------------------------------------------
# Parameter packing: two per-layer param lists -> few padded fused slabs
# ---------------------------------------------------------------------------
def pack_double_q_params(q1_params, q2_params, obs_dim, action_dim, out_pad=128):
    f32 = jnp.float32
    hidden_dim = q1_params[0].shape[1]
    n_layers = len(q1_params) // 2          # hidden_depth + 1
    n_hidden = n_layers - 2                 # number of (H, H) hidden layers
    h_pad = _round_up(hidden_dim, 128)
    width = 2 * h_pad                       # [ q1 lanes | q2 lanes ]
    in_dim = obs_dim + action_dim

    # Layer 0: (in_dim, 2*H_pad), then split rows into obs / action halves.
    w0 = jnp.zeros((in_dim, width), f32)
    w0 = w0.at[:, :hidden_dim].set(q1_params[0])
    w0 = w0.at[:, h_pad:h_pad + hidden_dim].set(q2_params[0])
    w0_obs = w0[:obs_dim]
    w0_act = w0[obs_dim:]
    b0 = jnp.zeros((1, width), f32)
    b0 = b0.at[:, :hidden_dim].set(q1_params[1])
    b0 = b0.at[:, h_pad:h_pad + hidden_dim].set(q2_params[1])

    # Hidden layers: block-diagonal per layer, stacked into one slab.
    if n_hidden > 0:
        wh = jnp.zeros((n_hidden, width, width), f32)
        bh = jnp.zeros((n_hidden, 1, width), f32)
        for i in range(n_hidden):
            w1, b1 = q1_params[2 * (i + 1)], q1_params[2 * (i + 1) + 1]
            w2, b2 = q2_params[2 * (i + 1)], q2_params[2 * (i + 1) + 1]
            wh = wh.at[i, :hidden_dim, :hidden_dim].set(w1)
            wh = wh.at[i, h_pad:h_pad + hidden_dim, h_pad:h_pad + hidden_dim].set(w2)
            bh = bh.at[i, :, :hidden_dim].set(b1)
            bh = bh.at[i, :, h_pad:h_pad + hidden_dim].set(b2)
    else:
        wh, bh = None, None

    # Final layer: both (H, 1) heads fused into one (2*H_pad, out_pad) matmul.
    wl = jnp.zeros((width, out_pad), f32)
    wl = wl.at[:hidden_dim, 0:1].set(q1_params[-2])
    wl = wl.at[h_pad:h_pad + hidden_dim, 1:2].set(q2_params[-2])
    bl = jnp.zeros((1, out_pad), f32)
    bl = bl.at[:, 0:1].set(q1_params[-1])
    bl = bl.at[:, 1:2].set(q2_params[-1])

    return w0_obs, w0_act, b0, wh, bh, wl, bl


# ---------------------------------------------------------------------------
# Forward wrapper
# ---------------------------------------------------------------------------
def double_q_critic_forward(obs, action, q1_params, q2_params):
    assert obs.shape[0] == action.shape[0]
    B, obs_dim = obs.shape
    action_dim = action.shape[1]
    OUT_PAD = 128

    w0_obs, w0_act, b0, wh, bh, wl, bl = pack_double_q_params(
        q1_params, q2_params, obs_dim, action_dim, OUT_PAD)
    n_hidden = 0 if wh is None else wh.shape[0]
    width = w0_obs.shape[1]

    # Batch tiling: tile rows (multiple of 8), weights resident across the grid.
    b8 = _round_up(B, 8)
    tm = min(256, b8)
    b_pad = _round_up(b8, tm)
    if b_pad != B:
        pad = b_pad - B
        obs = jnp.pad(obs, ((0, pad), (0, 0)))
        action = jnp.pad(action, ((0, pad), (0, 0)))
    grid = (b_pad // tm,)

    const2 = lambda i: (0, 0)
    const3 = lambda i: (0, 0, 0)
    in_specs = [
        pl.BlockSpec((tm, obs_dim), lambda i: (i, 0)),
        pl.BlockSpec((tm, action_dim), lambda i: (i, 0)),
        pl.BlockSpec(w0_obs.shape, const2),
        pl.BlockSpec(w0_act.shape, const2),
        pl.BlockSpec(b0.shape, const2),
    ]
    args = [obs, action, w0_obs, w0_act, b0]
    if n_hidden > 0:
        in_specs += [pl.BlockSpec(wh.shape, const3), pl.BlockSpec(bh.shape, const3)]
        args += [wh, bh]
    in_specs += [pl.BlockSpec(wl.shape, const2), pl.BlockSpec(bl.shape, const2)]
    args += [wl, bl]

    # Explicit VMEM budget: resident weights (x2 pipeline buffers) + activation
    # tiles (double-buffered) + intermediate, with slack; clamped for v7x's
    # smaller physical VMEM.
    weight_bytes = sum(a.size * a.dtype.itemsize for a in args[2:])
    act_bytes = 2 * tm * (obs_dim + action_dim + OUT_PAD) * 4
    inter_bytes = 2 * tm * width * 4
    est = 2 * weight_bytes + act_bytes + inter_bytes
    vmem_limit = int(min(max(2 * est, 16 * 1024 * 1024), 48 * 1024 * 1024))

    out = pl.pallas_call(
        _make_kernel(n_hidden),
        out_shape=jax.ShapeDtypeStruct((b_pad, OUT_PAD), jnp.float32),
        grid=grid,
        in_specs=in_specs,
        out_specs=pl.BlockSpec((tm, OUT_PAD), lambda i: (i, 0)),
        compiler_params=pltpu.CompilerParams(
            dimension_semantics=("parallel",),
            vmem_limit_bytes=vmem_limit),
    )(*args)

    q1 = out[:B, 0:1]
    q2 = out[:B, 1:2]
    return q1, q2


# ---------------------------------------------------------------------------
# Init + pure-JAX reference
# ---------------------------------------------------------------------------
def init_mlp_params(key, in_dim, hidden_dim, out_dim, hidden_depth):
    """Deterministic synthetic init matching utils.mlp layer shapes.

    utils.mlp(in, hidden, out, depth) =
        Linear(in, hidden), ReLU, [Linear(hidden, hidden), ReLU]*(depth-1), Linear(hidden, out)
    Weights stored as (in_features, out_features) so y = x @ W + b.
    """
    dims = [in_dim] + [hidden_dim] * hidden_depth + [out_dim]
    params = []
    for i in range(len(dims) - 1):
        key, kw, kb = jax.random.split(key, 3)
        fan_in, fan_out = dims[i], dims[i + 1]
        scale = 1.0 / jnp.sqrt(jnp.float32(fan_in))
        w = jax.random.normal(kw, (fan_in, fan_out), jnp.float32) * scale
        b = jax.random.normal(kb, (1, fan_out), jnp.float32) * 0.01
        params.append(w)
        params.append(b)
    return params, key


def double_q_critic_reference(obs, action, q1_params, q2_params):
    x = jnp.concatenate([obs, action], axis=-1)

    def mlp(h, params):
        n_layers = len(params) // 2
        for i in range(n_layers):
            h = h @ params[2 * i] + params[2 * i + 1]
            if i < n_layers - 1:
                h = jnp.maximum(h, 0.0)
        return h

    return mlp(x, q1_params), mlp(x, q2_params)


if __name__ == "__main__":
    batch = 8
    obs_dim = 24
    action_dim = 8
    hidden_dim = 32
    hidden_depth = 2

    key = jax.random.PRNGKey(0)
    key, k_obs, k_act = jax.random.split(key, 3)
    obs = jax.random.normal(k_obs, (batch, obs_dim), jnp.float32)
    action = jax.random.normal(k_act, (batch, action_dim), jnp.float32)

    in_dim = obs_dim + action_dim
    q1_params, key = init_mlp_params(key, in_dim, hidden_dim, 1, hidden_depth)
    q2_params, key = init_mlp_params(key, in_dim, hidden_dim, 1, hidden_depth)

    q1, q2 = double_q_critic_forward(obs, action, q1_params, q2_params)
    jax.block_until_ready((q1, q2))

    q1_ref, q2_ref = double_q_critic_reference(obs, action, q1_params, q2_params)
    assert q1.shape == (batch, 1) and q2.shape == (batch, 1)
    assert jnp.allclose(q1, q1_ref, atol=1e-4, rtol=1e-4)
    assert jnp.allclose(q2, q2_ref, atol=1e-4, rtol=1e-4)

    print("KERNEL_OK")
</pallas_src>

<mosaic_0001>
module attributes {stable_mosaic.version = 11 : i64} {
  func.func @kernel(%arg0: i32, %arg1: memref<8x24xf32, #tpu.memory_space<vmem>>, %arg2: memref<8x8xf32, #tpu.memory_space<vmem>>, %arg3: memref<24x256xf32, #tpu.memory_space<vmem>>, %arg4: memref<8x256xf32, #tpu.memory_space<vmem>>, %arg5: memref<1x256xf32, #tpu.memory_space<vmem>>, %arg6: memref<1x256x256xf32, #tpu.memory_space<vmem>>, %arg7: memref<1x1x256xf32, #tpu.memory_space<vmem>>, %arg8: memref<256x128xf32, #tpu.memory_space<vmem>>, %arg9: memref<1x128xf32, #tpu.memory_space<vmem>>, %arg10: memref<8x128xf32, #tpu.memory_space<vmem>>) attributes {dimension_semantics = [#tpu.dimension_semantics<parallel>], iteration_bounds = array<i64: 1>, scalar_prefetch = 0 : i64, scratch_operands = 0 : i64, tpu.core_type = #tpu.core_type<tc>, window_params = [{transform_indices = @transform_0, window_bounds = array<i64: 8, 24>}, {transform_indices = @transform_1, window_bounds = array<i64: 8, 8>}, {pipeline_mode = #tpu.pipeline_mode<synchronous>, transform_indices = @transform_2, window_bounds = array<i64: 24, 256>}, {pipeline_mode = #tpu.pipeline_mode<synchronous>, transform_indices = @transform_3, window_bounds = array<i64: 8, 256>}, {pipeline_mode = #tpu.pipeline_mode<synchronous>, transform_indices = @transform_4, window_bounds = array<i64: 1, 256>}, {pipeline_mode = #tpu.pipeline_mode<synchronous>, transform_indices = @transform_5, window_bounds = array<i64: 1, 256, 256>}, {pipeline_mode = #tpu.pipeline_mode<synchronous>, transform_indices = @transform_6, window_bounds = array<i64: 1, 1, 256>}, {pipeline_mode = #tpu.pipeline_mode<synchronous>, transform_indices = @transform_7, window_bounds = array<i64: 256, 128>}, {pipeline_mode = #tpu.pipeline_mode<synchronous>, transform_indices = @transform_8, window_bounds = array<i64: 1, 128>}, {transform_indices = @transform_9, window_bounds = array<i64: 8, 128>}]} {
    %c0 = arith.constant 0 : index
    %c0_0 = arith.constant 0 : index
    %0 = vector.load %arg1[%c0, %c0_0] : memref<8x24xf32, #tpu.memory_space<vmem>>, vector<8x24xf32>
    %c0_1 = arith.constant 0 : index
    %c0_2 = arith.constant 0 : index
    %1 = vector.load %arg3[%c0_1, %c0_2] : memref<24x256xf32, #tpu.memory_space<vmem>>, vector<24x256xf32>
    %cst = arith.constant dense<0.000000e+00> : vector<8x256xf32>
    %2 = tpu.matmul %0, %1, %cst {dimension_numbers = #tpu.dot_dimension_numbers<[1], [0], [0], [1], [0, 0, 1, 1], [], []>} : vector<8x24xf32>, vector<24x256xf32>, vector<8x256xf32> -> vector<8x256xf32>
    %c0_3 = arith.constant 0 : index
    %c0_4 = arith.constant 0 : index
    %3 = vector.load %arg2[%c0_3, %c0_4] : memref<8x8xf32, #tpu.memory_space<vmem>>, vector<8x8xf32>
    %c0_5 = arith.constant 0 : index
    %c0_6 = arith.constant 0 : index
    %4 = vector.load %arg4[%c0_5, %c0_6] : memref<8x256xf32, #tpu.memory_space<vmem>>, vector<8x256xf32>
    %cst_7 = arith.constant dense<0.000000e+00> : vector<8x256xf32>
    %5 = tpu.matmul %3, %4, %cst_7 {dimension_numbers = #tpu.dot_dimension_numbers<[1], [0], [0], [1], [0, 0, 1, 1], [], []>} : vector<8x8xf32>, vector<8x256xf32>, vector<8x256xf32> -> vector<8x256xf32>
    %6 = arith.addf %2, %5 : vector<8x256xf32>
    %c0_8 = arith.constant 0 : index
    %c0_9 = arith.constant 0 : index
    %7 = vector.load %arg5[%c0_8, %c0_9] : memref<1x256xf32, #tpu.memory_space<vmem>>, vector<1x256xf32>
    %8 = vector.broadcast %7 : vector<1x256xf32> to vector<8x256xf32>
    %9 = arith.addf %6, %8 : vector<8x256xf32>
    %cst_10 = arith.constant 0.000000e+00 : f32
    %10 = vector.broadcast %cst_10 : f32 to vector<8x256xf32>
    %11 = arith.maximumf %9, %10 : vector<8x256xf32>
    %c0_11 = arith.constant 0 : index
    %c0_12 = arith.constant 0 : index
    %c0_13 = arith.constant 0 : index
    %12 = vector.load %arg6[%c0_11, %c0_12, %c0_13] : memref<1x256x256xf32, #tpu.memory_space<vmem>>, vector<1x256x256xf32>
    %13 = vector.shape_cast %12 : vector<1x256x256xf32> to vector<256x256xf32>
    %cst_14 = arith.constant dense<0.000000e+00> : vector<8x256xf32>
    %14 = tpu.matmul %11, %13, %cst_14 {dimension_numbers = #tpu.dot_dimension_numbers<[1], [0], [0], [1], [0, 0, 1, 1], [], []>} : vector<8x256xf32>, vector<256x256xf32>, vector<8x256xf32> -> vector<8x256xf32>
    %c0_15 = arith.constant 0 : index
    %c0_16 = arith.constant 0 : index
    %c0_17 = arith.constant 0 : index
    %15 = vector.load %arg7[%c0_15, %c0_16, %c0_17] : memref<1x1x256xf32, #tpu.memory_space<vmem>>, vector<1x1x256xf32>
    %16 = vector.shape_cast %15 : vector<1x1x256xf32> to vector<1x256xf32>
    %17 = vector.broadcast %16 : vector<1x256xf32> to vector<8x256xf32>
    %18 = arith.addf %14, %17 : vector<8x256xf32>
    %cst_18 = arith.constant 0.000000e+00 : f32
    %19 = vector.broadcast %cst_18 : f32 to vector<8x256xf32>
    %20 = arith.maximumf %18, %19 : vector<8x256xf32>
    %c0_19 = arith.constant 0 : index
    %c0_20 = arith.constant 0 : index
    %21 = vector.load %arg8[%c0_19, %c0_20] : memref<256x128xf32, #tpu.memory_space<vmem>>, vector<256x128xf32>
    %cst_21 = arith.constant dense<0.000000e+00> : vector<8x128xf32>
    %22 = tpu.matmul %20, %21, %cst_21 {dimension_numbers = #tpu.dot_dimension_numbers<[1], [0], [0], [1], [0, 0, 1, 1], [], []>} : vector<8x256xf32>, vector<256x128xf32>, vector<8x128xf32> -> vector<8x128xf32>
    %c0_22 = arith.constant 0 : index
    %c0_23 = arith.constant 0 : index
    %23 = vector.load %arg9[%c0_22, %c0_23] : memref<1x128xf32, #tpu.memory_space<vmem>>, vector<1x128xf32>
    %24 = vector.broadcast %23 : vector<1x128xf32> to vector<8x128xf32>
    %25 = arith.addf %22, %24 : vector<8x128xf32>
    %c0_24 = arith.constant 0 : index
    %c0_25 = arith.constant 0 : index
    %26 = vector.load %arg10[%c0_24, %c0_25] : memref<8x128xf32, #tpu.memory_space<vmem>>, vector<8x128xf32>
    tpu.vector_store %arg10[%c0_24, %c0_25], %25 {strides = array<i32>} : memref<8x128xf32, #tpu.memory_space<vmem>>, vector<8x128xf32>,
    return
  }
  func.func @transform_0(%arg0: i32) -> (i32, i32) {
    %c0_i32 = arith.constant 0 : i32
    %c0_i32_0 = arith.constant 0 : i32
    return %arg0, %c0_i32 : i32, i32
  }
  func.func @transform_1(%arg0: i32) -> (i32, i32) {
    %c0_i32 = arith.constant 0 : i32
    %c0_i32_0 = arith.constant 0 : i32
    return %arg0, %c0_i32 : i32, i32
  }
  func.func @transform_2(%arg0: i32) -> (i32, i32) {
    %c0_i32 = arith.constant 0 : i32
    %c0_i32_0 = arith.constant 0 : i32
    %c0_i32_1 = arith.constant 0 : i32
    return %c0_i32, %c0_i32_0 : i32, i32
  }
  func.func @transform_3(%arg0: i32) -> (i32, i32) {
    %c0_i32 = arith.constant 0 : i32
    %c0_i32_0 = arith.constant 0 : i32
    %c0_i32_1 = arith.constant 0 : i32
    return %c0_i32, %c0_i32_0 : i32, i32
  }
  func.func @transform_4(%arg0: i32) -> (i32, i32) {
    %c0_i32 = arith.constant 0 : i32
    %c0_i32_0 = arith.constant 0 : i32
    %c0_i32_1 = arith.constant 0 : i32
    return %c0_i32, %c0_i32_0 : i32, i32
  }
  func.func @transform_5(%arg0: i32) -> (i32, i32, i32) {
    %c0_i32 = arith.constant 0 : i32
    %c0_i32_0 = arith.constant 0 : i32
    %c0_i32_1 = arith.constant 0 : i32
    %c0_i32_2 = arith.constant 0 : i32
    return %c0_i32, %c0_i32_0, %c0_i32_1 : i32, i32, i32
  }
  func.func @transform_6(%arg0: i32) -> (i32, i32, i32) {
    %c0_i32 = arith.constant 0 : i32
    %c0_i32_0 = arith.constant 0 : i32
    %c0_i32_1 = arith.constant 0 : i32
    %c0_i32_2 = arith.constant 0 : i32
    return %c0_i32, %c0_i32_0, %c0_i32_1 : i32, i32, i32
  }
  func.func @transform_7(%arg0: i32) -> (i32, i32) {
    %c0_i32 = arith.constant 0 : i32
    %c0_i32_0 = arith.constant 0 : i32
    %c0_i32_1 = arith.constant 0 : i32
    return %c0_i32, %c0_i32_0 : i32, i32
  }
  func.func @transform_8(%arg0: i32) -> (i32, i32) {
    %c0_i32 = arith.constant 0 : i32
    %c0_i32_0 = arith.constant 0 : i32
    %c0_i32_1 = arith.constant 0 : i32
    return %c0_i32, %c0_i32_0 : i32, i32
  }
  func.func @transform_9(%arg0: i32) -> (i32, i32) {
    %c0_i32 = arith.constant 0 : i32
    %c0_i32_0 = arith.constant 0 : i32
    return %arg0, %c0_i32 : i32, i32
  }
}

</mosaic_0001>

<llo_original>
// kernel: tpu_custom_call.1
$region0: #{tpu_custom_call.1}
  #allocation0 [shape = 'u32[]', space=smem, size = 0x4, offset = 0x4, fixed_abs, tag = 'smem constant byte address 0x4 - core index']
  #allocation1 [shape = 'u32[72,128]{1,0:T(1,128)}', space=vmem, size = 0x9000, scoped, tag = 'internal scratch']
  %s0 = inlined_call_operand.hbm [shape: f32[8,24], index: 0, kind: input, shape index: {}]
  %s1 = inlined_call_operand.hbm [shape: f32[8,8], index: 1, kind: input, shape index: {}]
  %s2 = inlined_call_operand.hbm [shape: f32[24,256], index: 2, kind: input, shape index: {}]
  %s3 = inlined_call_operand.hbm [shape: f32[8,256], index: 3, kind: input, shape index: {}]
  %s4 = inlined_call_operand.vmem [shape: f32[1,256], index: 4, kind: input, shape index: {}]
  %s5 = inlined_call_operand.hbm [shape: f32[1,256,256], index: 5, kind: input, shape index: {}]
  %s6 = inlined_call_operand.vmem [shape: f32[1,1,256], index: 6, kind: input, shape index: {}]
  %s7 = inlined_call_operand.hbm [shape: f32[256,128], index: 7, kind: input, shape index: {}]
  %s8 = inlined_call_operand.vmem [shape: f32[1,128], index: 8, kind: input, shape index: {}]
  %s9 = inlined_call_operand.hbm [shape: f32[8,128], index: 9, kind: output, shape index: {}]
  %s10 = sld [smem:[#allocation0]]
  $region70: #{tpu_custom_call.1} parent=0
    _
  %s12 = ssub.s32 1, %s10
  %s13 = scalar_select 0, %s12, %s10
  $region1: #{tpu_custom_call.1} parent=0
    #allocation2 [shape = 'u8[4096]{0}', space=vmem, size = 0x1000, scoped, tag = 'input window, operand 0, single buffered']
    #allocation3 [shape = 's32[1]{0}', space=sflag, size = 0x4, scoped, tag = 'scoped memory for tpu_custom_call.1']
    #allocation4 [shape = 's32[1]{0}', space=sflag, size = 0x4, scoped, tag = 'scoped memory for tpu_custom_call.1']
    #allocation5 [shape = 'u8[4096]{0}', space=vmem, size = 0x1000, scoped, tag = 'input window, operand 1, single buffered']
    #allocation6 [shape = 's32[1]{0}', space=sflag, size = 0x4, scoped, tag = 'scoped memory for tpu_custom_call.1']
    #allocation7 [shape = 'u8[24576]{0}', space=vmem, size = 0x6000, scoped, tag = 'input window, operand 2, single buffered']
    #allocation8 [shape = 'u8[8192]{0}', space=vmem, size = 0x2000, scoped, tag = 'input window, operand 3, single buffered']
    #allocation9 [shape = 's32[1]{0}', space=sflag, size = 0x4, scoped, tag = 'scoped memory for tpu_custom_call.1']
    #allocation10 [shape = 'u8[262144]{0}', space=vmem, size = 0x40000, scoped, tag = 'input window, operand 5, single buffered']
    #allocation11 [shape = 'u8[131072]{0}', space=vmem, size = 0x20000, scoped, tag = 'input window, operand 7, single buffered']
    #allocation12 [shape = 's32[1]{0}', space=sflag, size = 0x4, scoped, tag = 'scoped memory for tpu_custom_call.1']
    #allocation13 [shape = 'u8[4096]{0}', space=vmem, size = 0x1000, scoped, tag = 'output window, operand 0, single buffered']
    %14 = vsyncpa [#allocation3], 0
    %15 = vsyncpa [#allocation6], 0
    %16 = vsyncpa [#allocation9], 0
    %17 = vsyncpa [#allocation12], 0
    %18 = vsyncpa [#allocation4], 0
    // Predicated region
    $region2: #{tpu_custom_call.1} parent=1 // pred_check
      _
    $region3: #{tpu_custom_call.1} parent=1 // pred_check_branch
      %20 = sbr.rel (0) target = $region5
    $region4: #{tpu_custom_call.1} parent=1 // pred_region
      %22 = vsyncadd [#allocation3], 0
      %s24 = sshll.u32 %s0, 4
      %s25 = int_to_ptr.hbm [resolvable:$true] %s24
      %s26 = sshll.u32 [#allocation2], 4
      %s27 = int_to_ptr.vmem [resolvable:$true] %s26
      %29 = dma.hbm_to_vmem [thread:$0]  %s25, 128, %s27, [#allocation3]
    $region5: #{tpu_custom_call.1} parent=1 // pred_fallthru
      _
    // Predicated region
    $region6: #{tpu_custom_call.1} parent=1 // pred_check
      _
    $region7: #{tpu_custom_call.1} parent=1 // pred_check_branch
      %31 = sbr.rel (0) target = $region9
    $region8: #{tpu_custom_call.1} parent=1 // pred_region
      %33 = vsyncadd [#allocation6], 0
      %s35 = sshll.u32 %s1, 4
      %s36 = int_to_ptr.hbm [resolvable:$true] %s35
      %s37 = sshll.u32 [#allocation5], 4
      %s38 = int_to_ptr.vmem [resolvable:$true] %s37
      %40 = dma.hbm_to_vmem [thread:$0]  %s36, 128, %s38, [#allocation6]
    $region9: #{tpu_custom_call.1} parent=1 // pred_fallthru
      _
    // Predicated region
    $region10: #{tpu_custom_call.1} parent=1 // pred_check
      _
    $region11: #{tpu_custom_call.1} parent=1 // pred_check_branch
      %42 = sbr.rel (0) target = $region13
    $region12: #{tpu_custom_call.1} parent=1 // pred_region
      %44 = vsyncadd [#allocation6], 0
      %s45 = sshll.u32 %s2, 4
      %s46 = int_to_ptr.hbm [resolvable:$true] %s45
      %s47 = sshll.u32 [#allocation7], 4
      %s48 = int_to_ptr.vmem [resolvable:$true] %s47
      %53 = dma.hbm_to_vmem [thread:$0]  %s46, 768, %s48, [#allocation6], 256, 256, 16
    $region13: #{tpu_custom_call.1} parent=1 // pred_fallthru
      _
    // Predicated region
    $region14: #{tpu_custom_call.1} parent=1 // pred_check
      _
    $region15: #{tpu_custom_call.1} parent=1 // pred_check_branch
      %55 = sbr.rel (0) target = $region17
    $region16: #{tpu_custom_call.1} parent=1 // pred_region
      %57 = vsyncadd [#allocation9], 0
      %s59 = sshll.u32 %s3, 4
      %s60 = int_to_ptr.hbm [resolvable:$true] %s59
      %s61 = sshll.u32 [#allocation8], 4
      %s62 = int_to_ptr.vmem [resolvable:$true] %s61
      %64 = dma.hbm_to_vmem [thread:$0]  %s60, 256, %s62, [#allocation9]
    $region17: #{tpu_custom_call.1} parent=1 // pred_fallthru
      _
    // Predicated region
    $region18: #{tpu_custom_call.1} parent=1 // pred_check
      _
    $region19: #{tpu_custom_call.1} parent=1 // pred_check_branch
      %66 = sbr.rel (0) target = $region21
    $region20: #{tpu_custom_call.1} parent=1 // pred_region
      _
    $region21: #{tpu_custom_call.1} parent=1 // pred_fallthru
      _
    // Predicated region
    $region22: #{tpu_custom_call.1} parent=1 // pred_check
      _
    $region23: #{tpu_custom_call.1} parent=1 // pred_check_branch
      %68 = sbr.rel (0) target = $region25
    $region24: #{tpu_custom_call.1} parent=1 // pred_region
      %70 = vsyncadd [#allocation9], 0
      %s71 = sshll.u32 %s5, 4
      %s72 = int_to_ptr.hbm [resolvable:$true] %s71
      %s73 = sshll.u32 [#allocation10], 4
      %s74 = int_to_ptr.vmem [resolvable:$true] %s73
      %79 = dma.hbm_to_vmem [thread:$0]  %s72, 8192, %s74, [#allocation9], 256, 256, 16
    $region25: #{tpu_custom_call.1} parent=1 // pred_fallthru
      _
    // Predicated region
    $region26: #{tpu_custom_call.1} parent=1 // pred_check
      _
    $region27: #{tpu_custom_call.1} parent=1 // pred_check_branch
      %81 = sbr.rel (0) target = $region29
    $region28: #{tpu_custom_call.1} parent=1 // pred_region
      _
    $region29: #{tpu_custom_call.1} parent=1 // pred_fallthru
      _
    // Predicated region
    $region30: #{tpu_custom_call.1} parent=1 // pred_check
      _
    $region31: #{tpu_custom_call.1} parent=1 // pred_check_branch
      %83 = sbr.rel (0) target = $region33
    $region32: #{tpu_custom_call.1} parent=1 // pred_region
      %85 = vsyncadd [#allocation12], 0
      %s86 = sshll.u32 %s7, 4
      %s87 = int_to_ptr.hbm [resolvable:$true] %s86
      %s88 = sshll.u32 [#allocation11], 4
      %s89 = int_to_ptr.vmem [resolvable:$true] %s88
      %94 = dma.hbm_to_vmem [thread:$0]  %s87, 4096, %s89, [#allocation12], 128, 128, 8
    $region33: #{tpu_custom_call.1} parent=1 // pred_fallthru
      _
    // Predicated region
    $region34: #{tpu_custom_call.1} parent=1 // pred_check
      _
    $region35: #{tpu_custom_call.1} parent=1 // pred_check_branch
      %96 = sbr.rel (0) target = $region37
    $region36: #{tpu_custom_call.1} parent=1 // pred_region
      _
    $region37: #{tpu_custom_call.1} parent=1 // pred_fallthru
      _
    // Predicated region
    $region38: #{tpu_custom_call.1} parent=1 // pred_check
      _
    $region39: #{tpu_custom_call.1} parent=1 // pred_check_branch
      %98 = sbr.rel (0) target = $region41
    $region40: #{tpu_custom_call.1} parent=1 // pred_region
      %100 = dma.done [#allocation3], 128
    $region41: #{tpu_custom_call.1} parent=1 // pred_fallthru
      _
    // Predicated region
    $region42: #{tpu_custom_call.1} parent=1 // pred_check
      _
    $region43: #{tpu_custom_call.1} parent=1 // pred_check_branch
      %102 = sbr.rel (0) target = $region45
    $region44: #{tpu_custom_call.1} parent=1 // pred_region
      %104 = dma.done [#allocation6], 128
    $region45: #{tpu_custom_call.1} parent=1 // pred_fallthru
      _
    // Predicated region
    $region46: #{tpu_custom_call.1} parent=1 // pred_check
      _
    $region47: #{tpu_custom_call.1} parent=1 // pred_check_branch
      %106 = sbr.rel (0) target = $region49
    $region48: #{tpu_custom_call.1} parent=1 // pred_region
      %108 = dma.done [#allocation6], 768
    $region49: #{tpu_custom_call.1} parent=1 // pred_fallthru
      _
    // Predicated region
    $region50: #{tpu_custom_call.1} parent=1 // pred_check
      _
    $region51: #{tpu_custom_call.1} parent=1 // pred_check_branch
      %110 = sbr.rel (0) target = $region53
    $region52: #{tpu_custom_call.1} parent=1 // pred_region
      %112 = dma.done [#allocation9], 256
    $region53: #{tpu_custom_call.1} parent=1 // pred_fallthru
      _
    // Predicated region
    $region54: #{tpu_custom_call.1} parent=1 // pred_check
      _
    $region55: #{tpu_custom_call.1} parent=1 // pred_check_branch
      %114 = sbr.rel (0) target = $region57
    $region56: #{tpu_custom_call.1} parent=1 // pred_region
      %116 = dma.done [#allocation9], 8192
    $region57: #{tpu_custom_call.1} parent=1 // pred_fallthru
      _
    // Predicated region
    $region58: #{tpu_custom_call.1} parent=1 // pred_check
      _
    $region59: #{tpu_custom_call.1} parent=1 // pred_check_branch
      %118 = sbr.rel (0) target = $region61
    $region60: #{tpu_custom_call.1} parent=1 // pred_region
      %120 = dma.done [#allocation12], 4096
    $region61: #{tpu_custom_call.1} parent=1 // pred_fallthru
      _
    %v121 = vld [vmem:[#allocation2] sm:$0xff]
    %v122 = vld [vmem:[#allocation7] sm:$0xff]
    %v123 = vld [vmem:[#allocation7 + $0x8] sm:$0xff]
    %v124 = vld [vmem:[#allocation7 + $0x10] sm:$0xff]
    %v125 = vld [vmem:[#allocation7 + $0x18] sm:$0xff]
    %v126 = vld [vmem:[#allocation7 + $0x20] sm:$0xff]
    %v127 = vld [vmem:[#allocation7 + $0x28] sm:$0xff]
    %v128 = vld [vmem:[#allocation5] sm:$0xff]
    %v129 = vld [vmem:[#allocation8] sm:$0xff]
    %v130 = vld [vmem:[#allocation8 + $0x8] sm:$0xff]
    %vm131 = vcmask 64512
    %v133 = vsel %vm131, %v128, 0
    %135 = vmatpush.msra.mxu0 0.0
    %136 = vmatpush.msra.mxu0 0.0
    %137 = vmatpush.msra.mxu0 0.0
    %138 = vmatpush.msra.mxu0 0.0
    %139 = vmatpush.msra.mxu0 0.0
    %140 = vmatpush.msra.mxu0 0.0
    %141 = vmatpush.msra.mxu0 0.0
    %142 = vmatpush.msra.mxu0 0.0
    %143 = vmatpush.msra.mxu0 0.0
    %144 = vmatpush.msra.mxu0 0.0
    %145 = vmatpush.msra.mxu0 0.0
    %146 = vmatpush.msra.mxu0 0.0
    %147 = vmatpush.msra.mxu0 0.0
    %148 = vmatpush.msra.mxu0 0.0
    %149 = vmatpush.msra.mxu0 0.0
    %150 = vmatpush.msra.mxu0 %v129
    %151 = vmatmul.f32.gmra.mxu0 %v133
    %v152 = vpop.f32.mrf.mxu0
    %v153 = vadd.f32 0.0, %v152
    %154 = vdwg.mxu0
    %155 = vmatpush.msra.mxu0 0.0
    %156 = vmatpush.msra.mxu0 0.0
    %157 = vmatpush.msra.mxu0 0.0
    %158 = vmatpush.msra.mxu0 0.0
    %159 = vmatpush.msra.mxu0 0.0
    %160 = vmatpush.msra.mxu0 0.0
    %161 = vmatpush.msra.mxu0 0.0
    %162 = vmatpush.msra.mxu0 0.0
    %163 = vmatpush.msra.mxu0 0.0
    %164 = vmatpush.msra.mxu0 0.0
    %165 = vmatpush.msra.mxu0 0.0
    %166 = vmatpush.msra.mxu0 0.0
    %167 = vmatpush.msra.mxu0 0.0
    %168 = vmatpush.msra.mxu0 0.0
    %169 = vmatpush.msra.mxu0 0.0
    %170 = vmatpush.msra.mxu0 %v130
    %171 = vmatmul.f32.gmra.mxu0 %v133
    %v172 = vpop.f32.mrf.mxu0
    %v173 = vadd.f32 0.0, %v172
    %174 = vdwg.mxu0
    %vm175 = vcmask 195584
    %v177 = vsel %vm175, %v121, 0
    %179 = vmatpush.msra.mxu0 0.0
    %180 = vmatpush.msra.mxu0 0.0
    %181 = vmatpush.msra.mxu0 0.0
    %182 = vmatpush.msra.mxu0 0.0
    %183 = vmatpush.msra.mxu0 0.0
    %184 = vmatpush.msra.mxu0 0.0
    %185 = vmatpush.msra.mxu0 0.0
    %186 = vmatpush.msra.mxu0 0.0
    %187 = vmatpush.msra.mxu0 0.0
    %188 = vmatpush.msra.mxu0 0.0
    %189 = vmatpush.msra.mxu0 0.0
    %190 = vmatpush.msra.mxu0 0.0
    %191 = vmatpush.msra.mxu0 0.0
    %192 = vmatpush.msra.mxu0 %v126
    %193 = vmatpush.msra.mxu0 %v124
    %194 = vmatpush.msra.mxu0 %v122
    %195 = vmatmul.f32.gmra.mxu0 %v177
    %v196 = vpop.f32.mrf.mxu0
    %v197 = vadd.f32 %v153, %v196
    %198 = vdwg.mxu0
    %199 = vmatpush.msra.mxu0 0.0
    %200 = vmatpush.msra.mxu0 0.0
    %201 = vmatpush.msra.mxu0 0.0
    %202 = vmatpush.msra.mxu0 0.0
    %203 = vmatpush.msra.mxu0 0.0
    %204 = vmatpush.msra.mxu0 0.0
    %205 = vmatpush.msra.mxu0 0.0
    %206 = vmatpush.msra.mxu0 0.0
    %207 = vmatpush.msra.mxu0 0.0
    %208 = vmatpush.msra.mxu0 0.0
    %209 = vmatpush.msra.mxu0 0.0
    %210 = vmatpush.msra.mxu0 0.0
    %211 = vmatpush.msra.mxu0 0.0
    %212 = vmatpush.msra.mxu0 %v127
    %213 = vmatpush.msra.mxu0 %v125
    %214 = vmatpush.msra.mxu0 %v123
    %215 = vmatmul.f32.gmra.mxu0 %v177
    %v216 = vpop.f32.mrf.mxu0
    %v217 = vadd.f32 %v173, %v216
    %218 = vdwg.mxu0
    %v219 = vld [vmem:[%s4] sm:$0x3]
    %v221 = vperm.slane %v219, 0
    %v222 = vperm.slane %v219, 1
    %v225 = vadd.f32 %v197, %v221
    %v226 = vadd.f32 %v217, %v222
    %v227 = vmax.f32 %v225, 0.0
    %v228 = vmax.f32 %v226, 0.0
    %v229 = vld [vmem:[#allocation10] sm:$0xff]
    %v230 = vld [vmem:[#allocation10 + $0x8] sm:$0xff]
    %v231 = vld [vmem:[#allocation10 + $0x10] sm:$0xff]
    %v232 = vld [vmem:[#allocation10 + $0x18] sm:$0xff]
    %v233 = vld [vmem:[#allocation10 + $0x20] sm:$0xff]
    %v234 = vld [vmem:[#allocation10 + $0x28] sm:$0xff]
    %v235 = vld [vmem:[#allocation10 + $0x30] sm:$0xff]
    %v236 = vld [vmem:[#allocation10 + $0x38] sm:$0xff]
    %v237 = vld [vmem:[#allocation10 + $0x40] sm:$0xff]
    %v238 = vld [vmem:[#allocation10 + $0x48] sm:$0xff]
    %v239 = vld [vmem:[#allocation10 + $0x50] sm:$0xff]
    %v240 = vld [vmem:[#allocation10 + $0x58] sm:$0xff]
    %v241 = vld [vmem:[#allocation10 + $0x60] sm:$0xff]
    %v242 = vld [vmem:[#allocation10 + $0x68] sm:$0xff]
    %v243 = vld [vmem:[#allocation10 + $0x70] sm:$0xff]
    %v244 = vld [vmem:[#allocation10 + $0x78] sm:$0xff]
    %v245 = vld [vmem:[#allocation10 + $0x80] sm:$0xff]
    %v246 = vld [vmem:[#allocation10 + $0x88] sm:$0xff]
    %v247 = vld [vmem:[#allocation10 + $0x90] sm:$0xff]
    %v248 = vld [vmem:[#allocation10 + $0x98] sm:$0xff]
    %v249 = vld [vmem:[#allocation10 + $0xa0] sm:$0xff]
    %v250 = vld [vmem:[#allocation10 + $0xa8] sm:$0xff]
    %v251 = vld [vmem:[#allocation10 + $0xb0] sm:$0xff]
    %v252 = vld [vmem:[#allocation10 + $0xb8] sm:$0xff]
    %v253 = vld [vmem:[#allocation10 + $0xc0] sm:$0xff]
    %v254 = vld [vmem:[#allocation10 + $0xc8] sm:$0xff]
    %v255 = vld [vmem:[#allocation10 + $0xd0] sm:$0xff]
    %v256 = vld [vmem:[#allocation10 + $0xd8] sm:$0xff]
    %v257 = vld [vmem:[#allocation10 + $0xe0] sm:$0xff]
    %v258 = vld [vmem:[#allocation10 + $0xe8] sm:$0xff]
    %v259 = vld [vmem:[#allocation10 + $0xf0] sm:$0xff]
    %v260 = vld [vmem:[#allocation10 + $0xf8] sm:$0xff]
    %v261 = vld [vmem:[#allocation10 + $0x100] sm:$0xff]
    %v262 = vld [vmem:[#allocation10 + $0x108] sm:$0xff]
    %v263 = vld [vmem:[#allocation10 + $0x110] sm:$0xff]
    %v264 = vld [vmem:[#allocation10 + $0x118] sm:$0xff]
    %v265 = vld [vmem:[#allocation10 + $0x120] sm:$0xff]
    %v266 = vld [vmem:[#allocation10 + $0x128] sm:$0xff]
    %v267 = vld [vmem:[#allocation10 + $0x130] sm:$0xff]
    %v268 = vld [vmem:[#allocation10 + $0x138] sm:$0xff]
    %v269 = vld [vmem:[#allocation10 + $0x140] sm:$0xff]
    %v270 = vld [vmem:[#allocation10 + $0x148] sm:$0xff]
    %v271 = vld [vmem:[#allocation10 + $0x150] sm:$0xff]
    %v272 = vld [vmem:[#allocation10 + $0x158] sm:$0xff]
    %v273 = vld [vmem:[#allocation10 + $0x160] sm:$0xff]
    %v274 = vld [vmem:[#allocation10 + $0x168] sm:$0xff]
    %v275 = vld [vmem:[#allocation10 + $0x170] sm:$0xff]
    %v276 = vld [vmem:[#allocation10 + $0x178] sm:$0xff]
    %v277 = vld [vmem:[#allocation10 + $0x180] sm:$0xff]
    %v278 = vld [vmem:[#allocation10 + $0x188] sm:$0xff]
    %v279 = vld [vmem:[#allocation10 + $0x190] sm:$0xff]
    %v280 = vld [vmem:[#allocation10 + $0x198] sm:$0xff]
    %v281 = vld [vmem:[#allocation10 + $0x1a0] sm:$0xff]
    %v282 = vld [vmem:[#allocation10 + $0x1a8] sm:$0xff]
    %v283 = vld [vmem:[#allocation10 + $0x1b0] sm:$0xff]
    %v284 = vld [vmem:[#allocation10 + $0x1b8] sm:$0xff]
    %v285 = vld [vmem:[#allocation10 + $0x1c0] sm:$0xff]
    %v286 = vld [vmem:[#allocation10 + $0x1c8] sm:$0xff]
    %v287 = vld [vmem:[#allocation10 + $0x1d0] sm:$0xff]
    %v288 = vld [vmem:[#allocation10 + $0x1d8] sm:$0xff]
    %v289 = vld [vmem:[#allocation10 + $0x1e0] sm:$0xff]
    %v290 = vld [vmem:[#allocation10 + $0x1e8] sm:$0xff]
    %v291 = vld [vmem:[#allocation10 + $0x1f0] sm:$0xff]
    %v292 = vld [vmem:[#allocation10 + $0x1f8] sm:$0xff]
    %v293 = vld [vmem:[%s6] sm:$0x3]
    %v295 = vperm.slane %v293, 0
    %v296 = vperm.slane %v293, 1
    %299 = vmatpush.msra.mxu0 %v259
    %300 = vmatpush.msra.mxu0 %v257
    %301 = vmatpush.msra.mxu0 %v255
    %302 = vmatpush.msra.mxu0 %v253
    %303 = vmatpush.msra.mxu0 %v251
    %304 = vmatpush.msra.mxu0 %v249
    %305 = vmatpush.msra.mxu0 %v247
    %306 = vmatpush.msra.mxu0 %v245
    %307 = vmatpush.msra.mxu0 %v243
    %308 = vmatpush.msra.mxu0 %v241
    %309 = vmatpush.msra.mxu0 %v239
    %310 = vmatpush.msra.mxu0 %v237
    %311 = vmatpush.msra.mxu0 %v235
    %312 = vmatpush.msra.mxu0 %v233
    %313 = vmatpush.msra.mxu0 %v231
    %314 = vmatpush.msra.mxu0 %v229
    %315 = vmatmul.f32.gmra.mxu0 %v227
    %v316 = vpop.f32.mrf.mxu0
    %v317 = vadd.f32 %v295, %v316
    %318 = vdwg.mxu0
    %319 = vmatpush.msra.mxu0 %v291
    %320 = vmatpush.msra.mxu0 %v289
    %321 = vmatpush.msra.mxu0 %v287
    %322 = vmatpush.msra.mxu0 %v285
    %323 = vmatpush.msra.mxu0 %v283
    %324 = vmatpush.msra.mxu0 %v281
    %325 = vmatpush.msra.mxu0 %v279
    %326 = vmatpush.msra.mxu0 %v277
    %327 = vmatpush.msra.mxu0 %v275
    %328 = vmatpush.msra.mxu0 %v273
    %329 = vmatpush.msra.mxu0 %v271
    %330 = vmatpush.msra.mxu0 %v269
    %331 = vmatpush.msra.mxu0 %v267
    %332 = vmatpush.msra.mxu0 %v265
    %333 = vmatpush.msra.mxu0 %v263
    %334 = vmatpush.msra.mxu0 %v261
    %335 = vmatmul.f32.gmra.mxu0 %v228
    %v336 = vpop.f32.mrf.mxu0
    %v337 = vadd.f32 %v317, %v336
    %338 = vdwg.mxu0
    %339 = vmatpush.msra.mxu0 %v260
    %340 = vmatpush.msra.mxu0 %v258
    %341 = vmatpush.msra.mxu0 %v256
    %342 = vmatpush.msra.mxu0 %v254
    %343 = vmatpush.msra.mxu0 %v252
    %344 = vmatpush.msra.mxu0 %v250
    %345 = vmatpush.msra.mxu0 %v248
    %346 = vmatpush.msra.mxu0 %v246
    %347 = vmatpush.msra.mxu0 %v244
    %348 = vmatpush.msra.mxu0 %v242
    %349 = vmatpush.msra.mxu0 %v240
    %350 = vmatpush.msra.mxu0 %v238
    %351 = vmatpush.msra.mxu0 %v236
    %352 = vmatpush.msra.mxu0 %v234
    %353 = vmatpush.msra.mxu0 %v232
    %354 = vmatpush.msra.mxu0 %v230
    %355 = vmatmul.f32.gmra.mxu0 %v227
    %v356 = vpop.f32.mrf.mxu0
    %v357 = vadd.f32 %v296, %v356
    %358 = vdwg.mxu0
    %359 = vmatpush.msra.mxu0 %v292
    %360 = vmatpush.msra.mxu0 %v290
    %361 = vmatpush.msra.mxu0 %v288
    %362 = vmatpush.msra.mxu0 %v286
    %363 = vmatpush.msra.mxu0 %v284
    %364 = vmatpush.msra.mxu0 %v282
    %365 = vmatpush.msra.mxu0 %v280
    %366 = vmatpush.msra.mxu0 %v278
    %367 = vmatpush.msra.mxu0 %v276
    %368 = vmatpush.msra.mxu0 %v274
    %369 = vmatpush.msra.mxu0 %v272
    %370 = vmatpush.msra.mxu0 %v270
    %371 = vmatpush.msra.mxu0 %v268
    %372 = vmatpush.msra.mxu0 %v266
    %373 = vmatpush.msra.mxu0 %v264
    %374 = vmatpush.msra.mxu0 %v262
    %375 = vmatmul.f32.gmra.mxu0 %v228
    %v376 = vpop.f32.mrf.mxu0
    %v377 = vadd.f32 %v357, %v376
    %378 = vdwg.mxu0
    %v379 = vmax.f32 %v337, 0.0
    %v380 = vmax.f32 %v377, 0.0
    %v381 = vld [vmem:[#allocation11] sm:$0xff]
    %v382 = vld [vmem:[#allocation11 + $0x8] sm:$0xff]
    %v383 = vld [vmem:[#allocation11 + $0x10] sm:$0xff]
    %v384 = vld [vmem:[#allocation11 + $0x18] sm:$0xff]
    %v385 = vld [vmem:[#allocation11 + $0x20] sm:$0xff]
    %v386 = vld [vmem:[#allocation11 + $0x28] sm:$0xff]
    %v387 = vld [vmem:[#allocation11 + $0x30] sm:$0xff]
    %v388 = vld [vmem:[#allocation11 + $0x38] sm:$0xff]
    %v389 = vld [vmem:[#allocation11 + $0x40] sm:$0xff]
    %v390 = vld [vmem:[#allocation11 + $0x48] sm:$0xff]
    %v391 = vld [vmem:[#allocation11 + $0x50] sm:$0xff]
    %v392 = vld [vmem:[#allocation11 + $0x58] sm:$0xff]
    %v393 = vld [vmem:[#allocation11 + $0x60] sm:$0xff]
    %v394 = vld [vmem:[#allocation11 + $0x68] sm:$0xff]
    %v395 = vld [vmem:[#allocation11 + $0x70] sm:$0xff]
    %v396 = vld [vmem:[#allocation11 + $0x78] sm:$0xff]
    %v397 = vld [vmem:[#allocation11 + $0x80] sm:$0xff]
    %v398 = vld [vmem:[#allocation11 + $0x88] sm:$0xff]
    %v399 = vld [vmem:[#allocation11 + $0x90] sm:$0xff]
    %v400 = vld [vmem:[#allocation11 + $0x98] sm:$0xff]
    %v401 = vld [vmem:[#allocation11 + $0xa0] sm:$0xff]
    %v402 = vld [vmem:[#allocation11 + $0xa8] sm:$0xff]
    %v403 = vld [vmem:[#allocation11 + $0xb0] sm:$0xff]
    %v404 = vld [vmem:[#allocation11 + $0xb8] sm:$0xff]
    %v405 = vld [vmem:[#allocation11 + $0xc0] sm:$0xff]
    %v406 = vld [vmem:[#allocation11 + $0xc8] sm:$0xff]
    %v407 = vld [vmem:[#allocation11 + $0xd0] sm:$0xff]
    %v408 = vld [vmem:[#allocation11 + $0xd8] sm:$0xff]
    %v409 = vld [vmem:[#allocation11 + $0xe0] sm:$0xff]
    %v410 = vld [vmem:[#allocation11 + $0xe8] sm:$0xff]
    %v411 = vld [vmem:[#allocation11 + $0xf0] sm:$0xff]
    %v412 = vld [vmem:[#allocation11 + $0xf8] sm:$0xff]
    %v413 = vld [vmem:[%s8] sm:$0x1]
    %v415 = vperm.slane %v413, 0
    %417 = vmatpush.msra.mxu0 %v396
    %418 = vmatpush.msra.mxu0 %v395
    %419 = vmatpush.msra.mxu0 %v394
    %420 = vmatpush.msra.mxu0 %v393
    %421 = vmatpush.msra.mxu0 %v392
    %422 = vmatpush.msra.mxu0 %v391
    %423 = vmatpush.msra.mxu0 %v390
    %424 = vmatpush.msra.mxu0 %v389
    %425 = vmatpush.msra.mxu0 %v388
    %426 = vmatpush.msra.mxu0 %v387
    %427 = vmatpush.msra.mxu0 %v386
    %428 = vmatpush.msra.mxu0 %v385
    %429 = vmatpush.msra.mxu0 %v384
    %430 = vmatpush.msra.mxu0 %v383
    %431 = vmatpush.msra.mxu0 %v382
    %432 = vmatpush.msra.mxu0 %v381
    %433 = vmatmul.f32.gmra.mxu0 %v379
    %v434 = vpop.f32.mrf.mxu0
    %v435 = vadd.f32 %v415, %v434
    %436 = vdwg.mxu0
    %437 = vmatpush.msra.mxu0 %v412
    %438 = vmatpush.msra.mxu0 %v411
    %439 = vmatpush.msra.mxu0 %v410
    %440 = vmatpush.msra.mxu0 %v409
    %441 = vmatpush.msra.mxu0 %v408
    %442 = vmatpush.msra.mxu0 %v407
    %443 = vmatpush.msra.mxu0 %v406
    %444 = vmatpush.msra.mxu0 %v405
    %445 = vmatpush.msra.mxu0 %v404
    %446 = vmatpush.msra.mxu0 %v403
    %447 = vmatpush.msra.mxu0 %v402
    %448 = vmatpush.msra.mxu0 %v401
    %449 = vmatpush.msra.mxu0 %v400
    %450 = vmatpush.msra.mxu0 %v399
    %451 = vmatpush.msra.mxu0 %v398
    %452 = vmatpush.msra.mxu0 %v397
    %453 = vmatmul.f32.gmra.mxu0 %v380
    %v454 = vpop.f32.mrf.mxu0
    %v455 = vadd.f32 %v435, %v454
    %456 = vdwg.mxu0
    %457 = vst [vmem:[#allocation13] sm:$0xff] %v455
    // Predicated region
    $region62: #{tpu_custom_call.1} parent=1 // pred_check
      _
    $region63: #{tpu_custom_call.1} parent=1 // pred_check_branch
      %459 = sbr.rel (0) target = $region65
    $region64: #{tpu_custom_call.1} parent=1 // pred_region
      %461 = vsyncadd [#allocation4], 0
      %s463 = sshll.u32 [#allocation13], 4
      %s464 = int_to_ptr.vmem [resolvable:$true] %s463
      %s465 = sshll.u32 %s9, 4
      %s466 = int_to_ptr.hbm [resolvable:$true] %s465
      %468 = dma.vmem_to_hbm [thread:$0]  %s464, 128, %s466, [#allocation4]
    $region65: #{tpu_custom_call.1} parent=1 // pred_fallthru
      _
    // Predicated region
    $region66: #{tpu_custom_call.1} parent=1 // pred_check
      _
    $region67: #{tpu_custom_call.1} parent=1 // pred_check_branch
      %470 = sbr.rel (0) target = $region69
    $region68: #{tpu_custom_call.1} parent=1 // pred_region
      %472 = dma.done [#allocation4], 128
    $region69: #{tpu_custom_call.1} parent=1 // pred_fallthru
      _
    %473 = vsyncpa [#allocation3], 1
    %474 = vsyncpa [#allocation6], 1
    %475 = vsyncpa [#allocation9], 1
    %476 = vsyncpa [#allocation12], 1
    %477 = vsyncpa [#allocation4], 1

</llo_original>
